<compile_context>
chip_gen: v6e
topology: v6e:2x2x1
jax: 0.10.0
libtpu: 0.0.40
codegen_flags: <defaults>
</compile_context>

<pallas_src>
import functools

import jax
import jax.numpy as jnp
import numpy as np
from jax.experimental import pallas as pl
from jax.experimental.pallas import tpu as pltpu

LAMBDA = 0.02

# Tile caps: largest tiles that fit comfortably in every generation's VMEM
# (incl. v7x's 64 MiB) with double-buffered inputs + one f32 accumulator.
_TM_CAP = 256   # sublane dim (multiple of 8)
_TN_CAP = 512   # lane dim (multiple of 128)
_TK_CAP = 512   # contraction tile (multiple of 128) -> long MXU contractions


def _softplus_t(x, beta=1.0, threshold=20.0):
    # matches torch.nn.functional.softplus(x, beta=1, threshold=20)
    xb = x * beta
    return jnp.where(xb > threshold, x,
                     jnp.log1p(jnp.exp(jnp.minimum(xb, threshold))) / beta)


def _pick_tile(dim, cap, mult):
    """Largest tile <= cap that divides dim and is a multiple of `mult`;
    fall back to the full extent (always layout-legal)."""
    if dim <= cap:
        return dim
    start = cap - (cap % mult)
    for t in range(start, 0, -mult):
        if dim % t == 0:
            return t
    return dim


# ----------------------------------------------------------------------------
# Kernel 1: weight preparation (single pass over W_mu, W_p)
#   var_w       = (1e-6 + softplus(W_p))**2
#   kld_partial = per-column sum of
#       0.5 * (2*log(prior) - log(var_w) - 1 + (var_w + W_mu^2) / prior^2)
# Constants folded at trace time; no per-element divide / reciprocal.
# ----------------------------------------------------------------------------
def _prep_weights_kernel(wmu_ref, wp_ref, varw_ref, kld_ref, *,
                         two_log_prior, inv_prior_sq):
    k = pl.program_id(1)

    @pl.when(k == 0)
    def _():
        kld_ref[...] = jnp.zeros_like(kld_ref)

    w_mu = wmu_ref[...]
    std_w = 1e-6 + _softplus_t(wp_ref[...])
    var_w = std_w * std_w
    varw_ref[...] = var_w
    term = 0.5 * ((two_log_prior - 1.0) - jnp.log(var_w)
                  + (var_w + w_mu * w_mu) * inv_prior_sq)
    kld_ref[...] += jnp.sum(term, axis=0, keepdims=True)


def prep_weights(w_mu, w_p, prior_sig, *, tn=None, tk=None):
    K, N = w_mu.shape
    tn = _pick_tile(N, _TN_CAP, 128) if tn is None else tn
    tk = _pick_tile(K, _TK_CAP, 128) if tk is None else tk
    assert K % tk == 0 and N % tn == 0
    two_log_prior = float(2.0 * np.log(prior_sig))
    inv_prior_sq = float(1.0 / (prior_sig * prior_sig))
    var_w, kld_partial = pl.pallas_call(
        functools.partial(_prep_weights_kernel,
                          two_log_prior=two_log_prior,
                          inv_prior_sq=inv_prior_sq),
        out_shape=(jax.ShapeDtypeStruct((K, N), jnp.float32),
                   jax.ShapeDtypeStruct((1, N), jnp.float32)),
        grid_spec=pltpu.PrefetchScalarGridSpec(
            num_scalar_prefetch=0,
            grid=(N // tn, K // tk),
            in_specs=[pl.BlockSpec((tk, tn), lambda j, k: (k, j)),   # W_mu
                      pl.BlockSpec((tk, tn), lambda j, k: (k, j))],  # W_p
            out_specs=[pl.BlockSpec((tk, tn), lambda j, k: (k, j)),  # var_w
                       pl.BlockSpec((1, tn), lambda j, k: (0, j))],  # kld part
        ),
        compiler_params=pltpu.CompilerParams(
            dimension_semantics=("parallel", "arbitrary")),
    )(w_mu, w_p)
    return var_w, kld_partial


# ----------------------------------------------------------------------------
# Kernel 2: fused local-reparameterization activation (K-accumulated)
#   out = X @ W_mu + sqrt(X^2 @ var_w) * eps_W + bias_row
# mu accumulates directly into o_ref (output block index constant over k);
# only the variance accumulator lives in scratch.
# ----------------------------------------------------------------------------
def _bayes_linear_kernel(x_ref, wmu_ref, varw_ref, eps_ref, bias_ref, o_ref,
                         acc_var):
    k = pl.program_id(2)

    @pl.when(k == 0)
    def _():
        o_ref[...] = jnp.zeros_like(o_ref)
        acc_var[...] = jnp.zeros_like(acc_var)

    x = x_ref[...]
    o_ref[...] += jnp.dot(x, wmu_ref[...], preferred_element_type=jnp.float32)
    acc_var[...] += jnp.dot(x * x, varw_ref[...],
                            preferred_element_type=jnp.float32)

    @pl.when(k == pl.num_programs(2) - 1)
    def _():
        o_ref[...] = (o_ref[...] + jnp.sqrt(acc_var[...]) * eps_ref[...]
                      + bias_ref[...])


def bayes_linear_act(x, w_mu, var_w, eps_w, bias_row, *,
                     tm=None, tn=None, tk=None):
    M, K = x.shape
    Kw, N = w_mu.shape
    assert Kw == K
    tm = _pick_tile(M, _TM_CAP, 8) if tm is None else tm
    tn = _pick_tile(N, _TN_CAP, 128) if tn is None else tn
    tk = _pick_tile(K, _TK_CAP, 128) if tk is None else tk
    assert M % tm == 0 and N % tn == 0 and K % tk == 0

    grid = (M // tm, N // tn, K // tk)
    return pl.pallas_call(
        _bayes_linear_kernel,
        out_shape=jax.ShapeDtypeStruct((M, N), jnp.float32),
        grid_spec=pltpu.PrefetchScalarGridSpec(
            num_scalar_prefetch=0,
            grid=grid,
            in_specs=[
                pl.BlockSpec((tm, tk), lambda i, j, k: (i, k)),   # X
                pl.BlockSpec((tk, tn), lambda i, j, k: (k, j)),   # W_mu
                pl.BlockSpec((tk, tn), lambda i, j, k: (k, j)),   # var_w
                pl.BlockSpec((tm, tn), lambda i, j, k: (i, j)),   # eps_W
                pl.BlockSpec((1, tn), lambda i, j, k: (0, j)),    # bias row
            ],
            out_specs=pl.BlockSpec((tm, tn), lambda i, j, k: (i, j)),
            scratch_shapes=[pltpu.VMEM((tm, tn), jnp.float32)],
        ),
        compiler_params=pltpu.CompilerParams(
            dimension_semantics=("parallel", "parallel", "arbitrary")),
    )(x, w_mu, var_w, eps_w, bias_row)


# ----------------------------------------------------------------------------
# Kernel 3: eval path (mu-only): out = X @ W_mu + b_mu
# ----------------------------------------------------------------------------
def _mu_only_kernel(x_ref, wmu_ref, bias_ref, o_ref):
    k = pl.program_id(2)

    @pl.when(k == 0)
    def _():
        o_ref[...] = jnp.zeros_like(o_ref)

    o_ref[...] += jnp.dot(x_ref[...], wmu_ref[...],
                          preferred_element_type=jnp.float32)

    @pl.when(k == pl.num_programs(2) - 1)
    def _():
        o_ref[...] = o_ref[...] + bias_ref[...]


def mu_linear(x, w_mu, bias_row, *, tm=None, tn=None, tk=None):
    M, K = x.shape
    Kw, N = w_mu.shape
    assert Kw == K
    tm = _pick_tile(M, _TM_CAP, 8) if tm is None else tm
    tn = _pick_tile(N, _TN_CAP, 128) if tn is None else tn
    tk = _pick_tile(K, _TK_CAP, 128) if tk is None else tk
    assert M % tm == 0 and N % tn == 0 and K % tk == 0

    grid = (M // tm, N // tn, K // tk)
    return pl.pallas_call(
        _mu_only_kernel,
        out_shape=jax.ShapeDtypeStruct((M, N), jnp.float32),
        grid_spec=pltpu.PrefetchScalarGridSpec(
            num_scalar_prefetch=0,
            grid=grid,
            in_specs=[
                pl.BlockSpec((tm, tk), lambda i, j, k: (i, k)),   # X
                pl.BlockSpec((tk, tn), lambda i, j, k: (k, j)),   # W_mu
                pl.BlockSpec((1, tn), lambda i, j, k: (0, j)),    # b_mu row
            ],
            out_specs=pl.BlockSpec((tm, tn), lambda i, j, k: (i, j)),
        ),
        compiler_params=pltpu.CompilerParams(
            dimension_semantics=("parallel", "parallel", "arbitrary")),
    )(x, w_mu, bias_row)


# ----------------------------------------------------------------------------
# Plain-JAX helpers (glue / non-hot-path)
# ----------------------------------------------------------------------------
def _l2_normalize(v, eps=1e-12):
    return v / jnp.maximum(jnp.linalg.norm(v), eps)


def spectral_norm_upper_bound(key, w_mu, w_p, simu_times=10, iter_times=10):
    # TODO(synk): sequential power iteration + Monte-Carlo max term kept in
    # plain JAX (tiny matvecs, data-dependent RNG); not a Pallas hot path.
    ku, kv, ke = jax.random.split(key, 3)
    u = jax.random.uniform(ku, (w_mu.shape[0],), jnp.float32)
    v = jax.random.uniform(kv, (w_mu.shape[1],), jnp.float32)

    def body(_, uv):
        u, v = uv
        v = _l2_normalize(w_mu.T @ u)
        u = _l2_normalize(w_mu @ v)
        return (u, v)

    u, v = jax.lax.fori_loop(0, iter_times, body, (u, v))
    sigma = jnp.dot(u, w_mu @ v)

    std_w = 1e-6 + _softplus_t(w_p)
    res = (jnp.max(jnp.linalg.norm(std_w, axis=1))
           + jnp.max(jnp.linalg.norm(std_w, axis=0)))
    eps_all = jax.random.normal(ke, (simu_times,) + w_mu.shape, jnp.float32)
    tmp = jnp.mean(jnp.max(eps_all * std_w[None, :, :], axis=(1, 2)))
    return res + tmp + sigma


def kld_cost_vec(sig_p, mu_q, sig_q):
    return 0.5 * jnp.sum(2.0 * jnp.log(sig_p / sig_q) - 1.0
                         + (sig_q / sig_p) ** 2 + (mu_q / sig_p) ** 2)


# ----------------------------------------------------------------------------
# Module
# ----------------------------------------------------------------------------
class BayesLinearLocalReparam:
    def __init__(self, n_in, n_out, prior_sig, key):
        self.n_in = n_in
        self.n_out = n_out
        self.prior_sig = float(prior_sig)
        k1, k2, k3, k4 = jax.random.split(key, 4)
        self.W_mu = jax.random.uniform(k1, (n_in, n_out), jnp.float32, -0.1, 0.1)
        self.W_p = jax.random.uniform(k2, (n_in, n_out), jnp.float32, -3.0, -2.0)
        self.b_mu = jax.random.uniform(k3, (n_out,), jnp.float32, -0.1, 0.1)
        self.b_p = jax.random.uniform(k4, (n_out,), jnp.float32, -3.0, -2.0)

    def __call__(self, x, key, sample=True, training=True):
        B = x.shape[0]
        if (not training) and (not sample):
            # eval path: dedicated mu-only kernel (no variance matmul, no
            # softplus, no eps traffic).
            bias = self.b_mu.reshape(1, self.n_out)
            out = mu_linear(x, self.W_mu, bias)
            return out, 0.0, 0, 0.0

        k_w, k_b, k_lip = jax.random.split(key, 3)
        std_b = 1e-6 + _softplus_t(self.b_p)
        # TODO(synk): eps_W could be drawn in-kernel via pltpu.prng_seed +
        # stateful_normal to save an (M,N) HBM stream; kept as jax.random so
        # the random stream stays reproducible against the reference.
        eps_w = jax.random.normal(k_w, (B, self.n_out), jnp.float32)
        eps_b = jax.random.normal(k_b, (self.n_out,), jnp.float32)
        bias_row = (self.b_mu + std_b * eps_b).reshape(1, self.n_out)

        # Single pass over the weights: softplus hoisted out of the matmul
        # K loop + per-column KLD partials fused into the same stream.
        var_w, kld_partial = prep_weights(self.W_mu, self.W_p, self.prior_sig)
        output = bayes_linear_act(x, self.W_mu, var_w, eps_w, bias_row)

        a = jnp.sum(kld_partial)
        # NOTE: the bias prior sigma is hard-coded to 0.1 in the original
        # PyTorch module (KLD_cost(mu_p=0, sig_p=0.1, ...)); kept as-is.
        b = kld_cost_vec(0.1, self.b_mu, std_b)
        kld = a + b

        if LAMBDA < 1e-10:
            lip_loss = 0.0
        else:
            lip_loss = spectral_norm_upper_bound(k_lip, self.W_mu, self.W_p)
        return output, kld, 0, lip_loss ** 2


# ----------------------------------------------------------------------------
# Demo / self-check
# ----------------------------------------------------------------------------
if __name__ == "__main__":
    key = jax.random.PRNGKey(0)
    k_param, k_x, k_fwd = jax.random.split(key, 3)

    B, N_IN, N_OUT = 8, 256, 128
    layer = BayesLinearLocalReparam(N_IN, N_OUT, prior_sig=0.1, key=k_param)
    x = jax.random.normal(k_x, (B, N_IN), jnp.float32)

    # training / sampling path
    out, kld, _, lip2 = layer(x, k_fwd, sample=True, training=True)
    out = jax.block_until_ready(out)
    kld = jax.block_until_ready(kld)
    lip2 = jax.block_until_ready(lip2)

    # plain-JAX reference for the kernel outputs
    std_w = 1e-6 + _softplus_t(layer.W_p)
    std_b = 1e-6 + _softplus_t(layer.b_p)
    k_w, k_b, _ = jax.random.split(k_fwd, 3)
    eps_w = jax.random.normal(k_w, (B, N_OUT), jnp.float32)
    eps_b = jax.random.normal(k_b, (N_OUT,), jnp.float32)
    bias_row = (layer.b_mu + std_b * eps_b)
    ref_out = (x @ layer.W_mu
               + jnp.sqrt((x ** 2) @ (std_w ** 2)) * eps_w
               + bias_row[None, :])
    ref_kld = (kld_cost_vec(layer.prior_sig, layer.W_mu, std_w)
               + kld_cost_vec(0.1, layer.b_mu, std_b))

    np.testing.assert_allclose(np.asarray(out), np.asarray(ref_out),
                               rtol=1e-4, atol=1e-4)
    np.testing.assert_allclose(float(kld), float(ref_kld),
                               rtol=1e-4, atol=1e-2)
    assert np.isfinite(float(lip2))

    # eval path (mu-only kernel)
    out_eval, _, _, _ = layer(x, k_fwd, sample=False, training=False)
    out_eval = jax.block_until_ready(out_eval)
    ref_eval = x @ layer.W_mu + layer.b_mu[None, :]
    np.testing.assert_allclose(np.asarray(out_eval), np.asarray(ref_eval),
                               rtol=1e-4, atol=1e-4)

    # explicit small-tile call to exercise the multi-step K accumulation and
    # the 2-D prep grid.
    var_w2, kld_part2 = prep_weights(layer.W_mu, layer.W_p, layer.prior_sig,
                                     tn=128, tk=128)
    out2 = bayes_linear_act(x, layer.W_mu, var_w2, eps_w,
                            bias_row.reshape(1, N_OUT), tm=8, tn=128, tk=128)
    out2 = jax.block_until_ready(out2)
    np.testing.assert_allclose(np.asarray(out2), np.asarray(ref_out),
                               rtol=1e-4, atol=1e-4)
    np.testing.assert_allclose(
        float(jnp.sum(kld_part2) + kld_cost_vec(0.1, layer.b_mu, std_b)),
        float(ref_kld), rtol=1e-4, atol=1e-2)

    print("KERNEL_OK")
</pallas_src>

<mosaic_0001>
module attributes {stable_mosaic.version = 11 : i64} {
  func.func @_prep_weights_kernel(%arg0: i32, %arg1: i32, %arg2: memref<256x128xf32, #tpu.memory_space<vmem>>, %arg3: memref<256x128xf32, #tpu.memory_space<vmem>>, %arg4: memref<256x128xf32, #tpu.memory_space<vmem>>, %arg5: memref<1x128xf32, #tpu.memory_space<vmem>>) attributes {dimension_semantics = [#tpu.dimension_semantics<parallel>, #tpu.dimension_semantics<arbitrary>], iteration_bounds = array<i64: 1, 1>, scalar_prefetch = 0 : i64, scratch_operands = 0 : i64, tpu.core_type = #tpu.core_type<tc>, window_params = [{transform_indices = @transform_0, window_bounds = array<i64: 256, 128>}, {transform_indices = @transform_1, window_bounds = array<i64: 256, 128>}, {transform_indices = @transform_2, window_bounds = array<i64: 256, 128>}, {transform_indices = @transform_3, window_bounds = array<i64: 1, 128>}]} {
    %c0_i32 = arith.constant 0 : i32
    %0 = arith.cmpi eq, %arg1, %c0_i32 : i32
    %1 = arith.extui %0 : i1 to i32
    %c0_i32_0 = arith.constant 0 : i32
    %2 = arith.cmpi ne, %1, %c0_i32_0 : i32
    scf.if %2 {
      %cst_18 = arith.constant 0.000000e+00 : f32
      %35 = vector.broadcast %cst_18 : f32 to vector<1x128xf32>
      %c0_19 = arith.constant 0 : index
      %c0_20 = arith.constant 0 : index
      %36 = vector.load %arg5[%c0_19, %c0_20] : memref<1x128xf32, #tpu.memory_space<vmem>>, vector<1x128xf32>
      tpu.vector_store %arg5[%c0_19, %c0_20], %35 {strides = array<i32>} : memref<1x128xf32, #tpu.memory_space<vmem>>, vector<1x128xf32>,
    } else {
    }
    %c0 = arith.constant 0 : index
    %c0_1 = arith.constant 0 : index
    %3 = vector.load %arg2[%c0, %c0_1] : memref<256x128xf32, #tpu.memory_space<vmem>>, vector<256x128xf32>
    %c0_2 = arith.constant 0 : index
    %c0_3 = arith.constant 0 : index
    %4 = vector.load %arg3[%c0_2, %c0_3] : memref<256x128xf32, #tpu.memory_space<vmem>>, vector<256x128xf32>
    %cst = arith.constant 1.000000e+00 : f32
    %5 = vector.broadcast %cst : f32 to vector<256x128xf32>
    %6 = arith.mulf %4, %5 : vector<256x128xf32>
    %cst_4 = arith.constant 2.000000e+01 : f32
    %7 = vector.broadcast %cst_4 : f32 to vector<256x128xf32>
    %8 = arith.cmpf ogt, %6, %7 : vector<256x128xf32>
    %cst_5 = arith.constant 2.000000e+01 : f32
    %9 = vector.broadcast %cst_5 : f32 to vector<256x128xf32>
    %10 = arith.minimumf %6, %9 : vector<256x128xf32>
    %11 = math.exp %10 : vector<256x128xf32>
    %12 = math.log1p %11 : vector<256x128xf32>
    %cst_6 = arith.constant 1.000000e+00 : f32
    %13 = vector.broadcast %cst_6 : f32 to vector<256x128xf32>
    %14 = arith.divf %12, %13 : vector<256x128xf32>
    %15 = arith.select %8, %4, %14 : vector<256x128xi1>, vector<256x128xf32>
    %cst_7 = arith.constant 9.99999997E-7 : f32
    %16 = vector.broadcast %cst_7 : f32 to vector<256x128xf32>
    %17 = arith.addf %16, %15 : vector<256x128xf32>
    %18 = arith.mulf %17, %17 : vector<256x128xf32>
    %c0_8 = arith.constant 0 : index
    %c0_9 = arith.constant 0 : index
    %19 = vector.load %arg4[%c0_8, %c0_9] : memref<256x128xf32, #tpu.memory_space<vmem>>, vector<256x128xf32>
    tpu.vector_store %arg4[%c0_8, %c0_9], %18 {strides = array<i32>} : memref<256x128xf32, #tpu.memory_space<vmem>>, vector<256x128xf32>,
    %20 = math.log %18 : vector<256x128xf32>
    %cst_10 = arith.constant -5.60517025 : f32
    %21 = vector.broadcast %cst_10 : f32 to vector<256x128xf32>
    %22 = arith.subf %21, %20 : vector<256x128xf32>
    %23 = arith.mulf %3, %3 : vector<256x128xf32>
    %24 = arith.addf %18, %23 : vector<256x128xf32>
    %cst_11 = arith.constant 1.000000e+02 : f32
    %25 = vector.broadcast %cst_11 : f32 to vector<256x128xf32>
    %26 = arith.mulf %24, %25 : vector<256x128xf32>
    %27 = arith.addf %22, %26 : vector<256x128xf32>
    %cst_12 = arith.constant 5.000000e-01 : f32
    %28 = vector.broadcast %cst_12 : f32 to vector<256x128xf32>
    %29 = arith.mulf %28, %27 : vector<256x128xf32>
    %c0_13 = arith.constant 0 : index
    %c0_14 = arith.constant 0 : index
    %30 = vector.load %arg5[%c0_13, %c0_14] : memref<1x128xf32, #tpu.memory_space<vmem>>, vector<1x128xf32>
    %cst_15 = arith.constant dense<0.000000e+00> : vector<128xf32>
    %31 = vector.multi_reduction <add>, %29, %cst_15 [0] : vector<256x128xf32> to vector<128xf32>
    %32 = vector.shape_cast %31 : vector<128xf32> to vector<1x128xf32>
    %33 = arith.addf %30, %32 : vector<1x128xf32>
    %c0_16 = arith.constant 0 : index
    %c0_17 = arith.constant 0 : index
    %34 = vector.load %arg5[%c0_16, %c0_17] : memref<1x128xf32, #tpu.memory_space<vmem>>, vector<1x128xf32>
    tpu.vector_store %arg5[%c0_16, %c0_17], %33 {strides = array<i32>} : memref<1x128xf32, #tpu.memory_space<vmem>>, vector<1x128xf32>,
    return
  }
  func.func @transform_0(%arg0: i32, %arg1: i32) -> (i32, i32) {
    %c0_i32 = arith.constant 0 : i32
    return %arg1, %arg0 : i32, i32
  }
  func.func @transform_1(%arg0: i32, %arg1: i32) -> (i32, i32) {
    %c0_i32 = arith.constant 0 : i32
    return %arg1, %arg0 : i32, i32
  }
  func.func @transform_2(%arg0: i32, %arg1: i32) -> (i32, i32) {
    %c0_i32 = arith.constant 0 : i32
    return %arg1, %arg0 : i32, i32
  }
  func.func @transform_3(%arg0: i32, %arg1: i32) -> (i32, i32) {
    %c0_i32 = arith.constant 0 : i32
    %c0_i32_0 = arith.constant 0 : i32
    return %c0_i32, %arg0 : i32, i32
  }
}

</mosaic_0001>

<llo_original>
// kernel: tpu_custom_call.1
$region0: #{tpu_custom_call.1}
  #allocation0 [shape = 'u32[]', space=smem, size = 0x4, offset = 0x4, fixed_abs, tag = 'smem constant byte address 0x4 - core index']
  #allocation1 [shape = 'u32[144,128]{1,0:T(1,128)}', space=vmem, size = 0x12000, scoped, tag = 'internal scratch']
  %s0 = inlined_call_operand.hbm [shape: f32[256,128], index: 0, kind: input, shape index: {}]
  %s1 = inlined_call_operand.hbm [shape: f32[256,128], index: 1, kind: input, shape index: {}]
  %s2 = inlined_call_operand.hbm [shape: f32[256,128], index: 2, kind: output, shape index: {0}]
  %s3 = inlined_call_operand.hbm [shape: f32[1,128], index: 3, kind: output, shape index: {1}]
  %4 = xla_tuple %s2, %s3
  %s5 = sld [smem:[#allocation0]]
  $region38: #{tpu_custom_call.1} parent=0
    _
  %s7 = ssub.s32 1, %s5
  %s8 = scalar_select 0, %s7, %s5
  $region1: #{tpu_custom_call.1} parent=0
    #allocation2 [shape = 'u8[131072]{0}', space=vmem, size = 0x20000, scoped, tag = 'input window, operand 0, single buffered']
    #allocation3 [shape = 's32[1]{0}', space=sflag, size = 0x4, scoped, tag = 'scoped memory for tpu_custom_call.1']
    #allocation4 [shape = 's32[1]{0}', space=sflag, size = 0x4, scoped, tag = 'scoped memory for tpu_custom_call.1']
    #allocation5 [shape = 'u8[131072]{0}', space=vmem, size = 0x20000, scoped, tag = 'input window, operand 1, single buffered']
    #allocation6 [shape = 's32[1]{0}', space=sflag, size = 0x4, scoped, tag = 'scoped memory for tpu_custom_call.1']
    #allocation7 [shape = 'u8[131072]{0}', space=vmem, size = 0x20000, scoped, tag = 'output window, operand 0, single buffered']
    #allocation8 [shape = 'u8[512]{0}', space=vmem, size = 0x400, scoped, tag = 'output window, operand 1, single buffered']
    #allocation9 [shape = 's32[1]{0}', space=sflag, size = 0x4, scoped, tag = 'scoped memory for tpu_custom_call.1']
    %9 = vsyncpa [#allocation3], 0
    %10 = vsyncpa [#allocation6], 0
    %11 = vsyncpa [#allocation4], 0
    %12 = vsyncpa [#allocation9], 0
    // Predicated region
    $region2: #{tpu_custom_call.1} parent=1 // pred_check
      _
    $region3: #{tpu_custom_call.1} parent=1 // pred_check_branch
      %14 = sbr.rel (0) target = $region5
    $region4: #{tpu_custom_call.1} parent=1 // pred_region
      %s16 = ssub.s32 4096, 4096
      %17 = vsyncadd [#allocation3], %s16
      %s18 = sshll.u32 [#allocation2], 4
      %s19 = int_to_ptr.vmem [resolvable:$true] %s18
      %24 = dma.hbm_to_vmem [thread:$0]  %s0, 4096, %s19, [#allocation3], 128, 128, 8
    $region5: #{tpu_custom_call.1} parent=1 // pred_fallthru
      _
    // Predicated region
    $region6: #{tpu_custom_call.1} parent=1 // pred_check
      _
    $region7: #{tpu_custom_call.1} parent=1 // pred_check_branch
      %26 = sbr.rel (0) target = $region9
    $region8: #{tpu_custom_call.1} parent=1 // pred_region
      %s28 = ssub.s32 4096, 4096
      %29 = vsyncadd [#allocation6], %s28
      %s30 = sshll.u32 [#allocation5], 4
      %s31 = int_to_ptr.vmem [resolvable:$true] %s30
      %36 = dma.hbm_to_vmem [thread:$0]  %s1, 4096, %s31, [#allocation6], 128, 128, 8
    $region9: #{tpu_custom_call.1} parent=1 // pred_fallthru
      _
    // Predicated region
    $region10: #{tpu_custom_call.1} parent=1 // pred_check
      _
    $region11: #{tpu_custom_call.1} parent=1 // pred_check_branch
      %38 = sbr.rel (0) target = $region13
    $region12: #{tpu_custom_call.1} parent=1 // pred_region
      %39 = dma.done [#allocation3], 4096
    $region13: #{tpu_custom_call.1} parent=1 // pred_fallthru
      _
    // Predicated region
    $region14: #{tpu_custom_call.1} parent=1 // pred_check
      _
    $region15: #{tpu_custom_call.1} parent=1 // pred_check_branch
      %41 = sbr.rel (0) target = $region17
    $region16: #{tpu_custom_call.1} parent=1 // pred_region
      %42 = dma.done [#allocation6], 4096
    $region17: #{tpu_custom_call.1} parent=1 // pred_fallthru
      _
    %p43 = scmp.eq.s32.totalorder 0, 0
    // Predicated region
    $region18: #{tpu_custom_call.1} parent=1 // pred_check
      %p44 = pneg %p43
    $region19: #{tpu_custom_call.1} parent=1 // pred_check_branch
      %46 = sbr.rel (%p44) target = $region21
    $region20: #{tpu_custom_call.1} parent=1 // pred_region
      %47 = vst [vmem:[#allocation8] sm:$0x1] 0.0
    $region21: #{tpu_custom_call.1} parent=1 // pred_fallthru
      _
    %v48 = vld [vmem:[#allocation2] sm:$0xff]
    %v49 = vld [vmem:[#allocation2 + $0x8] sm:$0xff]
    %v50 = vld [vmem:[#allocation2 + $0x10] sm:$0xff]
    %v51 = vld [vmem:[#allocation2 + $0x18] sm:$0xff]
    %v52 = vld [vmem:[#allocation2 + $0x20] sm:$0xff]
    %v53 = vld [vmem:[#allocation2 + $0x28] sm:$0xff]
    %v54 = vld [vmem:[#allocation2 + $0x30] sm:$0xff]
    %v55 = vld [vmem:[#allocation2 + $0x38] sm:$0xff]
    %v56 = vld [vmem:[#allocation2 + $0x40] sm:$0xff]
    %v57 = vld [vmem:[#allocation2 + $0x48] sm:$0xff]
    %v58 = vld [vmem:[#allocation2 + $0x50] sm:$0xff]
    %v59 = vld [vmem:[#allocation2 + $0x58] sm:$0xff]
    %v60 = vld [vmem:[#allocation2 + $0x60] sm:$0xff]
    %v61 = vld [vmem:[#allocation2 + $0x68] sm:$0xff]
    %v62 = vld [vmem:[#allocation2 + $0x70] sm:$0xff]
    %v63 = vld [vmem:[#allocation2 + $0x78] sm:$0xff]
    %v64 = vld [vmem:[#allocation2 + $0x80] sm:$0xff]
    %v65 = vld [vmem:[#allocation2 + $0x88] sm:$0xff]
    %v66 = vld [vmem:[#allocation2 + $0x90] sm:$0xff]
    %v67 = vld [vmem:[#allocation2 + $0x98] sm:$0xff]
    %v68 = vld [vmem:[#allocation2 + $0xa0] sm:$0xff]
    %v69 = vld [vmem:[#allocation2 + $0xa8] sm:$0xff]
    %v70 = vld [vmem:[#allocation2 + $0xb0] sm:$0xff]
    %v71 = vld [vmem:[#allocation2 + $0xb8] sm:$0xff]
    %v72 = vld [vmem:[#allocation2 + $0xc0] sm:$0xff]
    %v73 = vld [vmem:[#allocation2 + $0xc8] sm:$0xff]
    %v74 = vld [vmem:[#allocation2 + $0xd0] sm:$0xff]
    %v75 = vld [vmem:[#allocation2 + $0xd8] sm:$0xff]
    %v76 = vld [vmem:[#allocation2 + $0xe0] sm:$0xff]
    %v77 = vld [vmem:[#allocation2 + $0xe8] sm:$0xff]
    %v78 = vld [vmem:[#allocation2 + $0xf0] sm:$0xff]
    %v79 = vld [vmem:[#allocation2 + $0xf8] sm:$0xff]
    %v80 = vld [vmem:[#allocation5] sm:$0xff]
    %v81 = vld [vmem:[#allocation5 + $0x8] sm:$0xff]
    %v82 = vld [vmem:[#allocation5 + $0x10] sm:$0xff]
    %v83 = vld [vmem:[#allocation5 + $0x18] sm:$0xff]
    %v84 = vld [vmem:[#allocation5 + $0x20] sm:$0xff]
    %v85 = vld [vmem:[#allocation5 + $0x28] sm:$0xff]
    %v86 = vld [vmem:[#allocation5 + $0x30] sm:$0xff]
    %v87 = vld [vmem:[#allocation5 + $0x38] sm:$0xff]
    %v88 = vld [vmem:[#allocation5 + $0x40] sm:$0xff]
    %v89 = vld [vmem:[#allocation5 + $0x48] sm:$0xff]
    %v90 = vld [vmem:[#allocation5 + $0x50] sm:$0xff]
    %v91 = vld [vmem:[#allocation5 + $0x58] sm:$0xff]
    %v92 = vld [vmem:[#allocation5 + $0x60] sm:$0xff]
    %v93 = vld [vmem:[#allocation5 + $0x68] sm:$0xff]
    %v94 = vld [vmem:[#allocation5 + $0x70] sm:$0xff]
    %v95 = vld [vmem:[#allocation5 + $0x78] sm:$0xff]
    %v96 = vld [vmem:[#allocation5 + $0x80] sm:$0xff]
    %v97 = vld [vmem:[#allocation5 + $0x88] sm:$0xff]
    %v98 = vld [vmem:[#allocation5 + $0x90] sm:$0xff]
    %v99 = vld [vmem:[#allocation5 + $0x98] sm:$0xff]
    %v100 = vld [vmem:[#allocation5 + $0xa0] sm:$0xff]
    %v101 = vld [vmem:[#allocation5 + $0xa8] sm:$0xff]
    %v102 = vld [vmem:[#allocation5 + $0xb0] sm:$0xff]
    %v103 = vld [vmem:[#allocation5 + $0xb8] sm:$0xff]
    %v104 = vld [vmem:[#allocation5 + $0xc0] sm:$0xff]
    %v105 = vld [vmem:[#allocation5 + $0xc8] sm:$0xff]
    %v106 = vld [vmem:[#allocation5 + $0xd0] sm:$0xff]
    %v107 = vld [vmem:[#allocation5 + $0xd8] sm:$0xff]
    %v108 = vld [vmem:[#allocation5 + $0xe0] sm:$0xff]
    %v109 = vld [vmem:[#allocation5 + $0xe8] sm:$0xff]
    %v110 = vld [vmem:[#allocation5 + $0xf0] sm:$0xff]
    %v111 = vld [vmem:[#allocation5 + $0xf8] sm:$0xff]
    %vm112 = vcmp.gt.f32.partialorder %v80, 20.0
    %vm113 = vcmp.gt.f32.partialorder %v81, 20.0
    %vm114 = vcmp.gt.f32.partialorder %v82, 20.0
    %vm115 = vcmp.gt.f32.partialorder %v83, 20.0
    %vm116 = vcmp.gt.f32.partialorder %v84, 20.0
    %vm117 = vcmp.gt.f32.partialorder %v85, 20.0
    %vm118 = vcmp.gt.f32.partialorder %v86, 20.0
    %vm119 = vcmp.gt.f32.partialorder %v87, 20.0
    %vm120 = vcmp.gt.f32.partialorder %v88, 20.0
    %vm121 = vcmp.gt.f32.partialorder %v89, 20.0
    %vm122 = vcmp.gt.f32.partialorder %v90, 20.0
    %vm123 = vcmp.gt.f32.partialorder %v91, 20.0
    %vm124 = vcmp.gt.f32.partialorder %v92, 20.0
    %vm125 = vcmp.gt.f32.partialorder %v93, 20.0
    %vm126 = vcmp.gt.f32.partialorder %v94, 20.0
    %vm127 = vcmp.gt.f32.partialorder %v95, 20.0
    %vm128 = vcmp.gt.f32.partialorder %v96, 20.0
    %vm129 = vcmp.gt.f32.partialorder %v97, 20.0
    %vm130 = vcmp.gt.f32.partialorder %v98, 20.0
    %vm131 = vcmp.gt.f32.partialorder %v99, 20.0
    %vm132 = vcmp.gt.f32.partialorder %v100, 20.0
    %vm133 = vcmp.gt.f32.partialorder %v101, 20.0
    %vm134 = vcmp.gt.f32.partialorder %v102, 20.0
    %vm135 = vcmp.gt.f32.partialorder %v103, 20.0
    %vm136 = vcmp.gt.f32.partialorder %v104, 20.0
    %vm137 = vcmp.gt.f32.partialorder %v105, 20.0
    %vm138 = vcmp.gt.f32.partialorder %v106, 20.0
    %vm139 = vcmp.gt.f32.partialorder %v107, 20.0
    %vm140 = vcmp.gt.f32.partialorder %v108, 20.0
    %vm141 = vcmp.gt.f32.partialorder %v109, 20.0
    %vm142 = vcmp.gt.f32.partialorder %v110, 20.0
    %vm143 = vcmp.gt.f32.partialorder %v111, 20.0
    %v144 = vmin.f32 %v80, 20.0
    %v145 = vmin.f32 %v81, 20.0
    %v146 = vmin.f32 %v82, 20.0
    %v147 = vmin.f32 %v83, 20.0
    %v148 = vmin.f32 %v84, 20.0
    %v149 = vmin.f32 %v85, 20.0
    %v150 = vmin.f32 %v86, 20.0
    %v151 = vmin.f32 %v87, 20.0
    %v152 = vmin.f32 %v88, 20.0
    %v153 = vmin.f32 %v89, 20.0
    %v154 = vmin.f32 %v90, 20.0
    %v155 = vmin.f32 %v91, 20.0
    %v156 = vmin.f32 %v92, 20.0
    %v157 = vmin.f32 %v93, 20.0
    %v158 = vmin.f32 %v94, 20.0
    %v159 = vmin.f32 %v95, 20.0
    %v160 = vmin.f32 %v96, 20.0
    %v161 = vmin.f32 %v97, 20.0
    %v162 = vmin.f32 %v98, 20.0
    %v163 = vmin.f32 %v99, 20.0
    %v164 = vmin.f32 %v100, 20.0
    %v165 = vmin.f32 %v101, 20.0
    %v166 = vmin.f32 %v102, 20.0
    %v167 = vmin.f32 %v103, 20.0
    %v168 = vmin.f32 %v104, 20.0
    %v169 = vmin.f32 %v105, 20.0
    %v170 = vmin.f32 %v106, 20.0
    %v171 = vmin.f32 %v107, 20.0
    %v172 = vmin.f32 %v108, 20.0
    %v173 = vmin.f32 %v109, 20.0
    %v174 = vmin.f32 %v110, 20.0
    %v175 = vmin.f32 %v111, 20.0
    %v176 = vmul.f32 %v144, 1.442695
    %v177 = vpow.pop %v176
    %v178 = vmul.f32 %v145, 1.442695
    %v179 = vpow.pop %v178
    %v180 = vmul.f32 %v146, 1.442695
    %v181 = vpow.pop %v180
    %v182 = vmul.f32 %v147, 1.442695
    %v183 = vpow.pop %v182
    %v184 = vmul.f32 %v148, 1.442695
    %v185 = vpow.pop %v184
    %v186 = vmul.f32 %v149, 1.442695
    %v187 = vpow.pop %v186
    %v188 = vmul.f32 %v150, 1.442695
    %v189 = vpow.pop %v188
    %v190 = vmul.f32 %v151, 1.442695
    %v191 = vpow.pop %v190
    %v192 = vmul.f32 %v152, 1.442695
    %v193 = vpow.pop %v192
    %v194 = vmul.f32 %v153, 1.442695
    %v195 = vpow.pop %v194
    %v196 = vmul.f32 %v154, 1.442695
    %v197 = vpow.pop %v196
    %v198 = vmul.f32 %v155, 1.442695
    %v199 = vpow.pop %v198
    %v200 = vmul.f32 %v156, 1.442695
    %v201 = vpow.pop %v200
    %v202 = vmul.f32 %v157, 1.442695
    %v203 = vpow.pop %v202
    %v204 = vmul.f32 %v158, 1.442695
    %v205 = vpow.pop %v204
    %v206 = vmul.f32 %v159, 1.442695
    %v207 = vpow.pop %v206
    %v208 = vmul.f32 %v160, 1.442695
    %v209 = vpow.pop %v208
    %v210 = vmul.f32 %v161, 1.442695
    %v211 = vpow.pop %v210
    %v212 = vmul.f32 %v162, 1.442695
    %v213 = vpow.pop %v212
    %v214 = vmul.f32 %v163, 1.442695
    %v215 = vpow.pop %v214
    %v216 = vmul.f32 %v164, 1.442695
    %v217 = vpow.pop %v216
    %v218 = vmul.f32 %v165, 1.442695
    %v219 = vpow.pop %v218
    %v220 = vmul.f32 %v166, 1.442695
    %v221 = vpow.pop %v220
    %v222 = vmul.f32 %v167, 1.442695
    %v223 = vpow.pop %v222
    %v224 = vmul.f32 %v168, 1.442695
    %v225 = vpow.pop %v224
    %v226 = vmul.f32 %v169, 1.442695
    %v227 = vpow.pop %v226
    %v228 = vmul.f32 %v170, 1.442695
    %v229 = vpow.pop %v228
    %v230 = vmul.f32 %v171, 1.442695
    %v231 = vpow.pop %v230
    %v232 = vmul.f32 %v172, 1.442695
    %v233 = vpow.pop %v232
    %v234 = vmul.f32 %v173, 1.442695
    %v235 = vpow.pop %v234
    %v236 = vmul.f32 %v174, 1.442695
    %v237 = vpow.pop %v236
    %v238 = vmul.f32 %v175, 1.442695
    %v239 = vpow.pop %v238
    %v240 = vadd.f32 %v177, 1.0
    %v241 = vlog2.pop %v240
    %v242 = vmul.f32 %v241, 0.6931472
    %v243 = vmul.f32 -0.5, %v177
    %v244 = vadd.f32 %v243, 1.0
    %v245 = vmul.f32 %v244, %v177
    %v246 = vand.u32 2147483647, %v177
    %vm247 = vcmp.lt.f32.partialorder %v246, 0.0004427343
    %v248 = vsel %vm247, %v245, %v242
    %v249 = vadd.f32 %v179, 1.0
    %v250 = vlog2.pop %v249
    %v251 = vmul.f32 %v250, 0.6931472
    %v252 = vmul.f32 -0.5, %v179
    %v253 = vadd.f32 %v252, 1.0
    %v254 = vmul.f32 %v253, %v179
    %v255 = vand.u32 2147483647, %v179
    %vm256 = vcmp.lt.f32.partialorder %v255, 0.0004427343
    %v257 = vsel %vm256, %v254, %v251
    %v258 = vadd.f32 %v181, 1.0
    %v259 = vlog2.pop %v258
    %v260 = vmul.f32 %v259, 0.6931472
    %v261 = vmul.f32 -0.5, %v181
    %v262 = vadd.f32 %v261, 1.0
    %v263 = vmul.f32 %v262, %v181
    %v264 = vand.u32 2147483647, %v181
    %vm265 = vcmp.lt.f32.partialorder %v264, 0.0004427343
    %v266 = vsel %vm265, %v263, %v260
    %v267 = vadd.f32 %v183, 1.0
    %v268 = vlog2.pop %v267
    %v269 = vmul.f32 %v268, 0.6931472
    %v270 = vmul.f32 -0.5, %v183
    %v271 = vadd.f32 %v270, 1.0
    %v272 = vmul.f32 %v271, %v183
    %v273 = vand.u32 2147483647, %v183
    %vm274 = vcmp.lt.f32.partialorder %v273, 0.0004427343
    %v275 = vsel %vm274, %v272, %v269
    %v276 = vadd.f32 %v185, 1.0
    %v277 = vlog2.pop %v276
    %v278 = vmul.f32 %v277, 0.6931472
    %v279 = vmul.f32 -0.5, %v185
    %v280 = vadd.f32 %v279, 1.0
    %v281 = vmul.f32 %v280, %v185
    %v282 = vand.u32 2147483647, %v185
    %vm283 = vcmp.lt.f32.partialorder %v282, 0.0004427343
    %v284 = vsel %vm283, %v281, %v278
    %v285 = vadd.f32 %v187, 1.0
    %v286 = vlog2.pop %v285
    %v287 = vmul.f32 %v286, 0.6931472
    %v288 = vmul.f32 -0.5, %v187
    %v289 = vadd.f32 %v288, 1.0
    %v290 = vmul.f32 %v289, %v187
    %v291 = vand.u32 2147483647, %v187
    %vm292 = vcmp.lt.f32.partialorder %v291, 0.0004427343
    %v293 = vsel %vm292, %v290, %v287
    %v294 = vadd.f32 %v189, 1.0
    %v295 = vlog2.pop %v294
    %v296 = vmul.f32 %v295, 0.6931472
    %v297 = vmul.f32 -0.5, %v189
    %v298 = vadd.f32 %v297, 1.0
    %v299 = vmul.f32 %v298, %v189
    %v300 = vand.u32 2147483647, %v189
    %vm301 = vcmp.lt.f32.partialorder %v300, 0.0004427343
    %v302 = vsel %vm301, %v299, %v296
    %v303 = vadd.f32 %v191, 1.0
    %v304 = vlog2.pop %v303
    %v305 = vmul.f32 %v304, 0.6931472
    %v306 = vmul.f32 -0.5, %v191
    %v307 = vadd.f32 %v306, 1.0
    %v308 = vmul.f32 %v307, %v191
    %v309 = vand.u32 2147483647, %v191
    %vm310 = vcmp.lt.f32.partialorder %v309, 0.0004427343
    %v311 = vsel %vm310, %v308, %v305
    %v312 = vadd.f32 %v193, 1.0
    %v313 = vlog2.pop %v312
    %v314 = vmul.f32 %v313, 0.6931472
    %v315 = vmul.f32 -0.5, %v193
    %v316 = vadd.f32 %v315, 1.0
    %v317 = vmul.f32 %v316, %v193
    %v318 = vand.u32 2147483647, %v193
    %vm319 = vcmp.lt.f32.partialorder %v318, 0.0004427343
    %v320 = vsel %vm319, %v317, %v314
    %v321 = vadd.f32 %v195, 1.0
    %v322 = vlog2.pop %v321
    %v323 = vmul.f32 %v322, 0.6931472
    %v324 = vmul.f32 -0.5, %v195
    %v325 = vadd.f32 %v324, 1.0
    %v326 = vmul.f32 %v325, %v195
    %v327 = vand.u32 2147483647, %v195
    %vm328 = vcmp.lt.f32.partialorder %v327, 0.0004427343
    %v329 = vsel %vm328, %v326, %v323
    %v330 = vadd.f32 %v197, 1.0
    %v331 = vlog2.pop %v330
    %v332 = vmul.f32 %v331, 0.6931472
    %v333 = vmul.f32 -0.5, %v197
    %v334 = vadd.f32 %v333, 1.0
    %v335 = vmul.f32 %v334, %v197
    %v336 = vand.u32 2147483647, %v197
    %vm337 = vcmp.lt.f32.partialorder %v336, 0.0004427343
    %v338 = vsel %vm337, %v335, %v332
    %v339 = vadd.f32 %v199, 1.0
    %v340 = vlog2.pop %v339
    %v341 = vmul.f32 %v340, 0.6931472
    %v342 = vmul.f32 -0.5, %v199
    %v343 = vadd.f32 %v342, 1.0
    %v344 = vmul.f32 %v343, %v199
    %v345 = vand.u32 2147483647, %v199
    %vm346 = vcmp.lt.f32.partialorder %v345, 0.0004427343
    %v347 = vsel %vm346, %v344, %v341
    %v348 = vadd.f32 %v201, 1.0
    %v349 = vlog2.pop %v348
    %v350 = vmul.f32 %v349, 0.6931472
    %v351 = vmul.f32 -0.5, %v201
    %v352 = vadd.f32 %v351, 1.0
    %v353 = vmul.f32 %v352, %v201
    %v354 = vand.u32 2147483647, %v201
    %vm355 = vcmp.lt.f32.partialorder %v354, 0.0004427343
    %v356 = vsel %vm355, %v353, %v350
    %v357 = vadd.f32 %v203, 1.0
    %v358 = vlog2.pop %v357
    %v359 = vmul.f32 %v358, 0.6931472
    %v360 = vmul.f32 -0.5, %v203
    %v361 = vadd.f32 %v360, 1.0
    %v362 = vmul.f32 %v361, %v203
    %v363 = vand.u32 2147483647, %v203
    %vm364 = vcmp.lt.f32.partialorder %v363, 0.0004427343
    %v365 = vsel %vm364, %v362, %v359
    %v366 = vadd.f32 %v205, 1.0
    %v367 = vlog2.pop %v366
    %v368 = vmul.f32 %v367, 0.6931472
    %v369 = vmul.f32 -0.5, %v205
    %v370 = vadd.f32 %v369, 1.0
    %v371 = vmul.f32 %v370, %v205
    %v372 = vand.u32 2147483647, %v205
    %vm373 = vcmp.lt.f32.partialorder %v372, 0.0004427343
    %v374 = vsel %vm373, %v371, %v368
    %v375 = vadd.f32 %v207, 1.0
    %v376 = vlog2.pop %v375
    %v377 = vmul.f32 %v376, 0.6931472
    %v378 = vmul.f32 -0.5, %v207
    %v379 = vadd.f32 %v378, 1.0
    %v380 = vmul.f32 %v379, %v207
    %v381 = vand.u32 2147483647, %v207
    %vm382 = vcmp.lt.f32.partialorder %v381, 0.0004427343
    %v383 = vsel %vm382, %v380, %v377
    %v384 = vadd.f32 %v209, 1.0
    %v385 = vlog2.pop %v384
    %v386 = vmul.f32 %v385, 0.6931472
    %v387 = vmul.f32 -0.5, %v209
    %v388 = vadd.f32 %v387, 1.0
    %v389 = vmul.f32 %v388, %v209
    %v390 = vand.u32 2147483647, %v209
    %vm391 = vcmp.lt.f32.partialorder %v390, 0.0004427343
    %v392 = vsel %vm391, %v389, %v386
    %v393 = vadd.f32 %v211, 1.0
    %v394 = vlog2.pop %v393
    %v395 = vmul.f32 %v394, 0.6931472
    %v396 = vmul.f32 -0.5, %v211
    %v397 = vadd.f32 %v396, 1.0
    %v398 = vmul.f32 %v397, %v211
    %v399 = vand.u32 2147483647, %v211
    %vm400 = vcmp.lt.f32.partialorder %v399, 0.0004427343
    %v401 = vsel %vm400, %v398, %v395
    %v402 = vadd.f32 %v213, 1.0
    %v403 = vlog2.pop %v402
    %v404 = vmul.f32 %v403, 0.6931472
    %v405 = vmul.f32 -0.5, %v213
    %v406 = vadd.f32 %v405, 1.0
    %v407 = vmul.f32 %v406, %v213
    %v408 = vand.u32 2147483647, %v213
    %vm409 = vcmp.lt.f32.partialorder %v408, 0.0004427343
    %v410 = vsel %vm409, %v407, %v404
    %v411 = vadd.f32 %v215, 1.0
    %v412 = vlog2.pop %v411
    %v413 = vmul.f32 %v412, 0.6931472
    %v414 = vmul.f32 -0.5, %v215
    %v415 = vadd.f32 %v414, 1.0
    %v416 = vmul.f32 %v415, %v215
    %v417 = vand.u32 2147483647, %v215
    %vm418 = vcmp.lt.f32.partialorder %v417, 0.0004427343
    %v419 = vsel %vm418, %v416, %v413
    %v420 = vadd.f32 %v217, 1.0
    %v421 = vlog2.pop %v420
    %v422 = vmul.f32 %v421, 0.6931472
    %v423 = vmul.f32 -0.5, %v217
    %v424 = vadd.f32 %v423, 1.0
    %v425 = vmul.f32 %v424, %v217
    %v426 = vand.u32 2147483647, %v217
    %vm427 = vcmp.lt.f32.partialorder %v426, 0.0004427343
    %v428 = vsel %vm427, %v425, %v422
    %v429 = vadd.f32 %v219, 1.0
    %v430 = vlog2.pop %v429
    %v431 = vmul.f32 %v430, 0.6931472
    %v432 = vmul.f32 -0.5, %v219
    %v433 = vadd.f32 %v432, 1.0
    %v434 = vmul.f32 %v433, %v219
    %v435 = vand.u32 2147483647, %v219
    %vm436 = vcmp.lt.f32.partialorder %v435, 0.0004427343
    %v437 = vsel %vm436, %v434, %v431
    %v438 = vadd.f32 %v221, 1.0
    %v439 = vlog2.pop %v438
    %v440 = vmul.f32 %v439, 0.6931472
    %v441 = vmul.f32 -0.5, %v221
    %v442 = vadd.f32 %v441, 1.0
    %v443 = vmul.f32 %v442, %v221
    %v444 = vand.u32 2147483647, %v221
    %vm445 = vcmp.lt.f32.partialorder %v444, 0.0004427343
    %v446 = vsel %vm445, %v443, %v440
    %v447 = vadd.f32 %v223, 1.0
    %v448 = vlog2.pop %v447
    %v449 = vmul.f32 %v448, 0.6931472
    %v450 = vmul.f32 -0.5, %v223
    %v451 = vadd.f32 %v450, 1.0
    %v452 = vmul.f32 %v451, %v223
    %v453 = vand.u32 2147483647, %v223
    %vm454 = vcmp.lt.f32.partialorder %v453, 0.0004427343
    %v455 = vsel %vm454, %v452, %v449
    %v456 = vadd.f32 %v225, 1.0
    %v457 = vlog2.pop %v456
    %v458 = vmul.f32 %v457, 0.6931472
    %v459 = vmul.f32 -0.5, %v225
    %v460 = vadd.f32 %v459, 1.0
    %v461 = vmul.f32 %v460, %v225
    %v462 = vand.u32 2147483647, %v225
    %vm463 = vcmp.lt.f32.partialorder %v462, 0.0004427343
    %v464 = vsel %vm463, %v461, %v458
    %v465 = vadd.f32 %v227, 1.0
    %v466 = vlog2.pop %v465
    %v467 = vmul.f32 %v466, 0.6931472
    %v468 = vmul.f32 -0.5, %v227
    %v469 = vadd.f32 %v468, 1.0
    %v470 = vmul.f32 %v469, %v227
    %v471 = vand.u32 2147483647, %v227
    %vm472 = vcmp.lt.f32.partialorder %v471, 0.0004427343
    %v473 = vsel %vm472, %v470, %v467
    %v474 = vadd.f32 %v229, 1.0
    %v475 = vlog2.pop %v474
    %v476 = vmul.f32 %v475, 0.6931472
    %v477 = vmul.f32 -0.5, %v229
    %v478 = vadd.f32 %v477, 1.0
    %v479 = vmul.f32 %v478, %v229
    %v480 = vand.u32 2147483647, %v229
    %vm481 = vcmp.lt.f32.partialorder %v480, 0.0004427343
    %v482 = vsel %vm481, %v479, %v476
    %v483 = vadd.f32 %v231, 1.0
    %v484 = vlog2.pop %v483
    %v485 = vmul.f32 %v484, 0.6931472
    %v486 = vmul.f32 -0.5, %v231
    %v487 = vadd.f32 %v486, 1.0
    %v488 = vmul.f32 %v487, %v231
    %v489 = vand.u32 2147483647, %v231
    %vm490 = vcmp.lt.f32.partialorder %v489, 0.0004427343
    %v491 = vsel %vm490, %v488, %v485
    %v492 = vadd.f32 %v233, 1.0
    %v493 = vlog2.pop %v492
    %v494 = vmul.f32 %v493, 0.6931472
    %v495 = vmul.f32 -0.5, %v233
    %v496 = vadd.f32 %v495, 1.0
    %v497 = vmul.f32 %v496, %v233
    %v498 = vand.u32 2147483647, %v233
    %vm499 = vcmp.lt.f32.partialorder %v498, 0.0004427343
    %v500 = vsel %vm499, %v497, %v494
    %v501 = vadd.f32 %v235, 1.0
    %v502 = vlog2.pop %v501
    %v503 = vmul.f32 %v502, 0.6931472
    %v504 = vmul.f32 -0.5, %v235
    %v505 = vadd.f32 %v504, 1.0
    %v506 = vmul.f32 %v505, %v235
    %v507 = vand.u32 2147483647, %v235
    %vm508 = vcmp.lt.f32.partialorder %v507, 0.0004427343
    %v509 = vsel %vm508, %v506, %v503
    %v510 = vadd.f32 %v237, 1.0
    %v511 = vlog2.pop %v510
    %v512 = vmul.f32 %v511, 0.6931472
    %v513 = vmul.f32 -0.5, %v237
    %v514 = vadd.f32 %v513, 1.0
    %v515 = vmul.f32 %v514, %v237
    %v516 = vand.u32 2147483647, %v237
    %vm517 = vcmp.lt.f32.partialorder %v516, 0.0004427343
    %v518 = vsel %vm517, %v515, %v512
    %v519 = vadd.f32 %v239, 1.0
    %v520 = vlog2.pop %v519
    %v521 = vmul.f32 %v520, 0.6931472
    %v522 = vmul.f32 -0.5, %v239
    %v523 = vadd.f32 %v522, 1.0
    %v524 = vmul.f32 %v523, %v239
    %v525 = vand.u32 2147483647, %v239
    %vm526 = vcmp.lt.f32.partialorder %v525, 0.0004427343
    %v527 = vsel %vm526, %v524, %v521
    %v528 = vsel %vm112, %v80, %v248
    %v529 = vsel %vm113, %v81, %v257
    %v530 = vsel %vm114, %v82, %v266
    %v531 = vsel %vm115, %v83, %v275
    %v532 = vsel %vm116, %v84, %v284
    %v533 = vsel %vm117, %v85, %v293
    %v534 = vsel %vm118, %v86, %v302
    %v535 = vsel %vm119, %v87, %v311
    %v536 = vsel %vm120, %v88, %v320
    %v537 = vsel %vm121, %v89, %v329
    %v538 = vsel %vm122, %v90, %v338
    %v539 = vsel %vm123, %v91, %v347
    %v540 = vsel %vm124, %v92, %v356
    %v541 = vsel %vm125, %v93, %v365
    %v542 = vsel %vm126, %v94, %v374
    %v543 = vsel %vm127, %v95, %v383
    %v544 = vsel %vm128, %v96, %v392
    %v545 = vsel %vm129, %v97, %v401
    %v546 = vsel %vm130, %v98, %v410
    %v547 = vsel %vm131, %v99, %v419
    %v548 = vsel %vm132, %v100, %v428
    %v549 = vsel %vm133, %v101, %v437
    %v550 = vsel %vm134, %v102, %v446
    %v551 = vsel %vm135, %v103, %v455
    %v552 = vsel %vm136, %v104, %v464
    %v553 = vsel %vm137, %v105, %v473
    %v554 = vsel %vm138, %v106, %v482
    %v555 = vsel %vm139, %v107, %v491
    %v556 = vsel %vm140, %v108, %v500
    %v557 = vsel %vm141, %v109, %v509
    %v558 = vsel %vm142, %v110, %v518
    %v559 = vsel %vm143, %v111, %v527
    %v560 = vadd.f32 %v528, 1e-06
    %v561 = vadd.f32 %v529, 1e-06
    %v562 = vadd.f32 %v530, 1e-06
    %v563 = vadd.f32 %v531, 1e-06
    %v564 = vadd.f32 %v532, 1e-06
    %v565 = vadd.f32 %v533, 1e-06
    %v566 = vadd.f32 %v534, 1e-06
    %v567 = vadd.f32 %v535, 1e-06
    %v568 = vadd.f32 %v536, 1e-06
    %v569 = vadd.f32 %v537, 1e-06
    %v570 = vadd.f32 %v538, 1e-06
    %v571 = vadd.f32 %v539, 1e-06
    %v572 = vadd.f32 %v540, 1e-06
    %v573 = vadd.f32 %v541, 1e-06
    %v574 = vadd.f32 %v542, 1e-06
    %v575 = vadd.f32 %v543, 1e-06
    %v576 = vadd.f32 %v544, 1e-06
    %v577 = vadd.f32 %v545, 1e-06
    %v578 = vadd.f32 %v546, 1e-06
    %v579 = vadd.f32 %v547, 1e-06
    %v580 = vadd.f32 %v548, 1e-06
    %v581 = vadd.f32 %v549, 1e-06
    %v582 = vadd.f32 %v550, 1e-06
    %v583 = vadd.f32 %v551, 1e-06
    %v584 = vadd.f32 %v552, 1e-06
    %v585 = vadd.f32 %v553, 1e-06
    %v586 = vadd.f32 %v554, 1e-06
    %v587 = vadd.f32 %v555, 1e-06
    %v588 = vadd.f32 %v556, 1e-06
    %v589 = vadd.f32 %v557, 1e-06
    %v590 = vadd.f32 %v558, 1e-06
    %v591 = vadd.f32 %v559, 1e-06
    %v592 = vmul.f32 %v560, %v560
    %v593 = vmul.f32 %v561, %v561
    %v594 = vmul.f32 %v562, %v562
    %v595 = vmul.f32 %v563, %v563
    %v596 = vmul.f32 %v564, %v564
    %v597 = vmul.f32 %v565, %v565
    %v598 = vmul.f32 %v566, %v566
    %v599 = vmul.f32 %v567, %v567
    %v600 = vmul.f32 %v568, %v568
    %v601 = vmul.f32 %v569, %v569
    %v602 = vmul.f32 %v570, %v570
    %v603 = vmul.f32 %v571, %v571
    %v604 = vmul.f32 %v572, %v572
    %v605 = vmul.f32 %v573, %v573
    %v606 = vmul.f32 %v574, %v574
    %v607 = vmul.f32 %v575, %v575
    %v608 = vmul.f32 %v576, %v576
    %v609 = vmul.f32 %v577, %v577
    %v610 = vmul.f32 %v578, %v578
    %v611 = vmul.f32 %v579, %v579
    %v612 = vmul.f32 %v580, %v580
    %v613 = vmul.f32 %v581, %v581
    %v614 = vmul.f32 %v582, %v582
    %v615 = vmul.f32 %v583, %v583
    %v616 = vmul.f32 %v584, %v584
    %v617 = vmul.f32 %v585, %v585
    %v618 = vmul.f32 %v586, %v586
    %v619 = vmul.f32 %v587, %v587
    %v620 = vmul.f32 %v588, %v588
    %v621 = vmul.f32 %v589, %v589
    %v622 = vmul.f32 %v590, %v590
    %v623 = vmul.f32 %v591, %v591
    %624 = vst [vmem:[#allocation7] sm:$0xff] %v592
    %625 = vst [vmem:[#allocation7 + $0x8] sm:$0xff] %v593
    %626 = vst [vmem:[#allocation7 + $0x10] sm:$0xff] %v594
    %627 = vst [vmem:[#allocation7 + $0x18] sm:$0xff] %v595
    %628 = vst [vmem:[#allocation7 + $0x20] sm:$0xff] %v596
    %629 = vst [vmem:[#allocation7 + $0x28] sm:$0xff] %v597
    %630 = vst [vmem:[#allocation7 + $0x30] sm:$0xff] %v598
    %631 = vst [vmem:[#allocation7 + $0x38] sm:$0xff] %v599
    %632 = vst [vmem:[#allocation7 + $0x40] sm:$0xff] %v600
    %633 = vst [vmem:[#allocation7 + $0x48] sm:$0xff] %v601
    %634 = vst [vmem:[#allocation7 + $0x50] sm:$0xff] %v602
    %635 = vst [vmem:[#allocation7 + $0x58] sm:$0xff] %v603
    %636 = vst [vmem:[#allocation7 + $0x60] sm:$0xff] %v604
    %637 = vst [vmem:[#allocation7 + $0x68] sm:$0xff] %v605
    %638 = vst [vmem:[#allocation7 + $0x70] sm:$0xff] %v606
    %639 = vst [vmem:[#allocation7 + $0x78] sm:$0xff] %v607
    %640 = vst [vmem:[#allocation7 + $0x80] sm:$0xff] %v608
    %641 = vst [vmem:[#allocation7 + $0x88] sm:$0xff] %v609
    %642 = vst [vmem:[#allocation7 + $0x90] sm:$0xff] %v610
    %643 = vst [vmem:[#allocation7 + $0x98] sm:$0xff] %v611
    %644 = vst [vmem:[#allocation7 + $0xa0] sm:$0xff] %v612
    %645 = vst [vmem:[#allocation7 + $0xa8] sm:$0xff] %v613
    %646 = vst [vmem:[#allocation7 + $0xb0] sm:$0xff] %v614
    %647 = vst [vmem:[#allocation7 + $0xb8] sm:$0xff] %v615
    %648 = vst [vmem:[#allocation7 + $0xc0] sm:$0xff] %v616
    %649 = vst [vmem:[#allocation7 + $0xc8] sm:$0xff] %v617
    %650 = vst [vmem:[#allocation7 + $0xd0] sm:$0xff] %v618
    %651 = vst [vmem:[#allocation7 + $0xd8] sm:$0xff] %v619
    %652 = vst [vmem:[#allocation7 + $0xe0] sm:$0xff] %v620
    %653 = vst [vmem:[#allocation7 + $0xe8] sm:$0xff] %v621
    %654 = vst [vmem:[#allocation7 + $0xf0] sm:$0xff] %v622
    %655 = vst [vmem:[#allocation7 + $0xf8] sm:$0xff] %v623
    %v656 = vlog2.pop %v592
    %v657 = vmul.f32 %v656, 0.6931472
    %v658 = vlog2.pop %v593
    %v659 = vmul.f32 %v658, 0.6931472
    %v660 = vlog2.pop %v594
    %v661 = vmul.f32 %v660, 0.6931472
    %v662 = vlog2.pop %v595
    %v663 = vmul.f32 %v662, 0.6931472
    %v664 = vlog2.pop %v596
    %v665 = vmul.f32 %v664, 0.6931472
    %v666 = vlog2.pop %v597
    %v667 = vmul.f32 %v666, 0.6931472
    %v668 = vlog2.pop %v598
    %v669 = vmul.f32 %v668, 0.6931472
    %v670 = vlog2.pop %v599
    %v671 = vmul.f32 %v670, 0.6931472
    %v672 = vlog2.pop %v600
    %v673 = vmul.f32 %v672, 0.6931472
    %v674 = vlog2.pop %v601
    %v675 = vmul.f32 %v674, 0.6931472
    %v676 = vlog2.pop %v602
    %v677 = vmul.f32 %v676, 0.6931472
    %v678 = vlog2.pop %v603
    %v679 = vmul.f32 %v678, 0.6931472
    %v680 = vlog2.pop %v604
    %v681 = vmul.f32 %v680, 0.6931472
    %v682 = vlog2.pop %v605
    %v683 = vmul.f32 %v682, 0.6931472
    %v684 = vlog2.pop %v606
    %v685 = vmul.f32 %v684, 0.6931472
    %v686 = vlog2.pop %v607
    %v687 = vmul.f32 %v686, 0.6931472
    %v688 = vlog2.pop %v608
    %v689 = vmul.f32 %v688, 0.6931472
    %v690 = vlog2.pop %v609
    %v691 = vmul.f32 %v690, 0.6931472
    %v692 = vlog2.pop %v610
    %v693 = vmul.f32 %v692, 0.6931472
    %v694 = vlog2.pop %v611
    %v695 = vmul.f32 %v694, 0.6931472
    %v696 = vlog2.pop %v612
    %v697 = vmul.f32 %v696, 0.6931472
    %v698 = vlog2.pop %v613
    %v699 = vmul.f32 %v698, 0.6931472
    %v700 = vlog2.pop %v614
    %v701 = vmul.f32 %v700, 0.6931472
    %v702 = vlog2.pop %v615
    %v703 = vmul.f32 %v702, 0.6931472
    %v704 = vlog2.pop %v616
    %v705 = vmul.f32 %v704, 0.6931472
    %v706 = vlog2.pop %v617
    %v707 = vmul.f32 %v706, 0.6931472
    %v708 = vlog2.pop %v618
    %v709 = vmul.f32 %v708, 0.6931472
    %v710 = vlog2.pop %v619
    %v711 = vmul.f32 %v710, 0.6931472
    %v712 = vlog2.pop %v620
    %v713 = vmul.f32 %v712, 0.6931472
    %v714 = vlog2.pop %v621
    %v715 = vmul.f32 %v714, 0.6931472
    %v716 = vlog2.pop %v622
    %v717 = vmul.f32 %v716, 0.6931472
    %v718 = vlog2.pop %v623
    %v719 = vmul.f32 %v718, 0.6931472
    %v720 = vsub.f32 -5.6051702, %v657
    %v721 = vsub.f32 -5.6051702, %v659
    %v722 = vsub.f32 -5.6051702, %v661
    %v723 = vsub.f32 -5.6051702, %v663
    %v724 = vsub.f32 -5.6051702, %v665
    %v725 = vsub.f32 -5.6051702, %v667
    %v726 = vsub.f32 -5.6051702, %v669
    %v727 = vsub.f32 -5.6051702, %v671
    %v728 = vsub.f32 -5.6051702, %v673
    %v729 = vsub.f32 -5.6051702, %v675
    %v730 = vsub.f32 -5.6051702, %v677
    %v731 = vsub.f32 -5.6051702, %v679
    %v732 = vsub.f32 -5.6051702, %v681
    %v733 = vsub.f32 -5.6051702, %v683
    %v734 = vsub.f32 -5.6051702, %v685
    %v735 = vsub.f32 -5.6051702, %v687
    %v736 = vsub.f32 -5.6051702, %v689
    %v737 = vsub.f32 -5.6051702, %v691
    %v738 = vsub.f32 -5.6051702, %v693
    %v739 = vsub.f32 -5.6051702, %v695
    %v740 = vsub.f32 -5.6051702, %v697
    %v741 = vsub.f32 -5.6051702, %v699
    %v742 = vsub.f32 -5.6051702, %v701
    %v743 = vsub.f32 -5.6051702, %v703
    %v744 = vsub.f32 -5.6051702, %v705
    %v745 = vsub.f32 -5.6051702, %v707
    %v746 = vsub.f32 -5.6051702, %v709
    %v747 = vsub.f32 -5.6051702, %v711
    %v748 = vsub.f32 -5.6051702, %v713
    %v749 = vsub.f32 -5.6051702, %v715
    %v750 = vsub.f32 -5.6051702, %v717
    %v751 = vsub.f32 -5.6051702, %v719
    %v752 = vmul.f32 %v48, %v48
    %v753 = vmul.f32 %v49, %v49
    %v754 = vmul.f32 %v50, %v50
    %v755 = vmul.f32 %v51, %v51
    %v756 = vmul.f32 %v52, %v52
    %v757 = vmul.f32 %v53, %v53
    %v758 = vmul.f32 %v54, %v54
    %v759 = vmul.f32 %v55, %v55
    %v760 = vmul.f32 %v56, %v56
    %v761 = vmul.f32 %v57, %v57
    %v762 = vmul.f32 %v58, %v58
    %v763 = vmul.f32 %v59, %v59
    %v764 = vmul.f32 %v60, %v60
    %v765 = vmul.f32 %v61, %v61
    %v766 = vmul.f32 %v62, %v62
    %v767 = vmul.f32 %v63, %v63
    %v768 = vmul.f32 %v64, %v64
    %v769 = vmul.f32 %v65, %v65
    %v770 = vmul.f32 %v66, %v66
    %v771 = vmul.f32 %v67, %v67
    %v772 = vmul.f32 %v68, %v68
    %v773 = vmul.f32 %v69, %v69
    %v774 = vmul.f32 %v70, %v70
    %v775 = vmul.f32 %v71, %v71
    %v776 = vmul.f32 %v72, %v72
    %v777 = vmul.f32 %v73, %v73
    %v778 = vmul.f32 %v74, %v74
    %v779 = vmul.f32 %v75, %v75
    %v780 = vmul.f32 %v76, %v76
    %v781 = vmul.f32 %v77, %v77
    %v782 = vmul.f32 %v78, %v78
    %v783 = vmul.f32 %v79, %v79
    %v784 = vadd.f32 %v592, %v752
    %v785 = vadd.f32 %v593, %v753
    %v786 = vadd.f32 %v594, %v754
    %v787 = vadd.f32 %v595, %v755
    %v788 = vadd.f32 %v596, %v756
    %v789 = vadd.f32 %v597, %v757
    %v790 = vadd.f32 %v598, %v758
    %v791 = vadd.f32 %v599, %v759
    %v792 = vadd.f32 %v600, %v760
    %v793 = vadd.f32 %v601, %v761
    %v794 = vadd.f32 %v602, %v762
    %v795 = vadd.f32 %v603, %v763
    %v796 = vadd.f32 %v604, %v764
    %v797 = vadd.f32 %v605, %v765
    %v798 = vadd.f32 %v606, %v766
    %v799 = vadd.f32 %v607, %v767
    %v800 = vadd.f32 %v608, %v768
    %v801 = vadd.f32 %v609, %v769
    %v802 = vadd.f32 %v610, %v770
    %v803 = vadd.f32 %v611, %v771
    %v804 = vadd.f32 %v612, %v772
    %v805 = vadd.f32 %v613, %v773
    %v806 = vadd.f32 %v614, %v774
    %v807 = vadd.f32 %v615, %v775
    %v808 = vadd.f32 %v616, %v776
    %v809 = vadd.f32 %v617, %v777
    %v810 = vadd.f32 %v618, %v778
    %v811 = vadd.f32 %v619, %v779
    %v812 = vadd.f32 %v620, %v780
    %v813 = vadd.f32 %v621, %v781
    %v814 = vadd.f32 %v622, %v782
    %v815 = vadd.f32 %v623, %v783
    %v816 = vmul.f32 %v784, 100.0
    %v817 = vmul.f32 %v785, 100.0
    %v818 = vmul.f32 %v786, 100.0
    %v819 = vmul.f32 %v787, 100.0
    %v820 = vmul.f32 %v788, 100.0
    %v821 = vmul.f32 %v789, 100.0
    %v822 = vmul.f32 %v790, 100.0
    %v823 = vmul.f32 %v791, 100.0
    %v824 = vmul.f32 %v792, 100.0
    %v825 = vmul.f32 %v793, 100.0
    %v826 = vmul.f32 %v794, 100.0
    %v827 = vmul.f32 %v795, 100.0
    %v828 = vmul.f32 %v796, 100.0
    %v829 = vmul.f32 %v797, 100.0
    %v830 = vmul.f32 %v798, 100.0
    %v831 = vmul.f32 %v799, 100.0
    %v832 = vmul.f32 %v800, 100.0
    %v833 = vmul.f32 %v801, 100.0
    %v834 = vmul.f32 %v802, 100.0
    %v835 = vmul.f32 %v803, 100.0
    %v836 = vmul.f32 %v804, 100.0
    %v837 = vmul.f32 %v805, 100.0
    %v838 = vmul.f32 %v806, 100.0
    %v839 = vmul.f32 %v807, 100.0
    %v840 = vmul.f32 %v808, 100.0
    %v841 = vmul.f32 %v809, 100.0
    %v842 = vmul.f32 %v810, 100.0
    %v843 = vmul.f32 %v811, 100.0
    %v844 = vmul.f32 %v812, 100.0
    %v845 = vmul.f32 %v813, 100.0
    %v846 = vmul.f32 %v814, 100.0
    %v847 = vmul.f32 %v815, 100.0
    %v848 = vadd.f32 %v720, %v816
    %v849 = vadd.f32 %v721, %v817
    %v850 = vadd.f32 %v722, %v818
    %v851 = vadd.f32 %v723, %v819
    %v852 = vadd.f32 %v724, %v820
    %v853 = vadd.f32 %v725, %v821
    %v854 = vadd.f32 %v726, %v822
    %v855 = vadd.f32 %v727, %v823
    %v856 = vadd.f32 %v728, %v824
    %v857 = vadd.f32 %v729, %v825
    %v858 = vadd.f32 %v730, %v826
    %v859 = vadd.f32 %v731, %v827
    %v860 = vadd.f32 %v732, %v828
    %v861 = vadd.f32 %v733, %v829
    %v862 = vadd.f32 %v734, %v830
    %v863 = vadd.f32 %v735, %v831
    %v864 = vadd.f32 %v736, %v832
    %v865 = vadd.f32 %v737, %v833
    %v866 = vadd.f32 %v738, %v834
    %v867 = vadd.f32 %v739, %v835
    %v868 = vadd.f32 %v740, %v836
    %v869 = vadd.f32 %v741, %v837
    %v870 = vadd.f32 %v742, %v838
    %v871 = vadd.f32 %v743, %v839
    %v872 = vadd.f32 %v744, %v840
    %v873 = vadd.f32 %v745, %v841
    %v874 = vadd.f32 %v746, %v842
    %v875 = vadd.f32 %v747, %v843
    %v876 = vadd.f32 %v748, %v844
    %v877 = vadd.f32 %v749, %v845
    %v878 = vadd.f32 %v750, %v846
    %v879 = vadd.f32 %v751, %v847
    %v880 = vmul.f32 %v848, 0.5
    %v881 = vmul.f32 %v849, 0.5
    %v882 = vmul.f32 %v850, 0.5
    %v883 = vmul.f32 %v851, 0.5
    %v884 = vmul.f32 %v852, 0.5
    %v885 = vmul.f32 %v853, 0.5
    %v886 = vmul.f32 %v854, 0.5
    %v887 = vmul.f32 %v855, 0.5
    %v888 = vmul.f32 %v856, 0.5
    %v889 = vmul.f32 %v857, 0.5
    %v890 = vmul.f32 %v858, 0.5
    %v891 = vmul.f32 %v859, 0.5
    %v892 = vmul.f32 %v860, 0.5
    %v893 = vmul.f32 %v861, 0.5
    %v894 = vmul.f32 %v862, 0.5
    %v895 = vmul.f32 %v863, 0.5
    %v896 = vmul.f32 %v864, 0.5
    %v897 = vmul.f32 %v865, 0.5
    %v898 = vmul.f32 %v866, 0.5
    %v899 = vmul.f32 %v867, 0.5
    %v900 = vmul.f32 %v868, 0.5
    %v901 = vmul.f32 %v869, 0.5
    %v902 = vmul.f32 %v870, 0.5
    %v903 = vmul.f32 %v871, 0.5
    %v904 = vmul.f32 %v872, 0.5
    %v905 = vmul.f32 %v873, 0.5
    %v906 = vmul.f32 %v874, 0.5
    %v907 = vmul.f32 %v875, 0.5
    %v908 = vmul.f32 %v876, 0.5
    %v909 = vmul.f32 %v877, 0.5
    %v910 = vmul.f32 %v878, 0.5
    %v911 = vmul.f32 %v879, 0.5
    %v912 = vld [vmem:[#allocation8] sm:$0x1]
    %v913 = vadd.f32 %v880, %v881
    %v914 = vadd.f32 %v913, %v882
    %v915 = vadd.f32 %v914, %v883
    %v916 = vadd.f32 %v915, %v884
    %v917 = vadd.f32 %v916, %v885
    %v918 = vadd.f32 %v917, %v886
    %v919 = vadd.f32 %v918, %v887
    %v920 = vadd.f32 %v919, %v888
    %v921 = vadd.f32 %v920, %v889
    %v922 = vadd.f32 %v921, %v890
    %v923 = vadd.f32 %v922, %v891
    %v924 = vadd.f32 %v923, %v892
    %v925 = vadd.f32 %v924, %v893
    %v926 = vadd.f32 %v925, %v894
    %v927 = vadd.f32 %v926, %v895
    %v928 = vadd.f32 %v927, %v896
    %v929 = vadd.f32 %v928, %v897
    %v930 = vadd.f32 %v929, %v898
    %v931 = vadd.f32 %v930, %v899
    %v932 = vadd.f32 %v931, %v900
    %v933 = vadd.f32 %v932, %v901
    %v934 = vadd.f32 %v933, %v902
    %v935 = vadd.f32 %v934, %v903
    %v936 = vadd.f32 %v935, %v904
    %v937 = vadd.f32 %v936, %v905
    %v938 = vadd.f32 %v937, %v906
    %v939 = vadd.f32 %v938, %v907
    %v940 = vadd.f32 %v939, %v908
    %v941 = vadd.f32 %v940, %v909
    %v942 = vadd.f32 %v941, %v910
    %v943 = vadd.f32 %v942, %v911
    %v944 = vrot.slane %v943, 4
    %v945 = vadd.f32 %v943, %v944
    %v946 = vrot.slane %v945, 2
    %v947 = vadd.f32 %v945, %v946
    %v948 = vrot.slane %v947, 1
    %v949 = vadd.f32 %v947, %v948
    %v950 = vadd.f32 %v912, %v949
    %951 = vst [vmem:[#allocation8] sm:$0x1] %v950
    // Predicated region
    $region22: #{tpu_custom_call.1} parent=1 // pred_check
      _
    $region23: #{tpu_custom_call.1} parent=1 // pred_check_branch
      %953 = sbr.rel (0) target = $region25
    $region24: #{tpu_custom_call.1} parent=1 // pred_region
      %s955 = ssub.s32 4096, 4096
      %956 = vsyncadd [#allocation4], %s955
      %s957 = sshll.u32 [#allocation7], 4
      %s958 = int_to_ptr.vmem [resolvable:$true] %s957
      %963 = dma.vmem_to_hbm [thread:$0]  %s958, 4096, %s2, [#allocation4], 128, 128, 8
    $region25: #{tpu_custom_call.1} parent=1 // pred_fallthru
      _
    // Predicated region
    $region26: #{tpu_custom_call.1} parent=1 // pred_check
      _
    $region27: #{tpu_custom_call.1} parent=1 // pred_check_branch
      %965 = sbr.rel (0) target = $region29
    $region28: #{tpu_custom_call.1} parent=1 // pred_region
      %s967 = ssub.s32 16, 16
      %968 = vsyncadd [#allocation9], %s967
      %s970 = sshll.u32 [#allocation8], 4
      %s971 = int_to_ptr.vmem [resolvable:$true] %s970
      %973 = dma.vmem_to_hbm [thread:$0]  %s971, 16, %s3, [#allocation9]
    $region29: #{tpu_custom_call.1} parent=1 // pred_fallthru
      _
    // Predicated region
    $region30: #{tpu_custom_call.1} parent=1 // pred_check
      _
    $region31: #{tpu_custom_call.1} parent=1 // pred_check_branch
      %975 = sbr.rel (0) target = $region33
    $region32: #{tpu_custom_call.1} parent=1 // pred_region
      %976 = dma.done [#allocation4], 4096
    $region33: #{tpu_custom_call.1} parent=1 // pred_fallthru
      _
    // Predicated region
    $region34: #{tpu_custom_call.1} parent=1 // pred_check
      _
    $region35: #{tpu_custom_call.1} parent=1 // pred_check_branch
      %978 = sbr.rel (0) target = $region37
    $region36: #{tpu_custom_call.1} parent=1 // pred_region
      %979 = dma.done [#allocation9], 16
    $region37: #{tpu_custom_call.1} parent=1 // pred_fallthru
      _
    %980 = vsyncpa [#allocation3], 1
    %981 = vsyncpa [#allocation6], 1
    %982 = vsyncpa [#allocation4], 1
    %983 = vsyncpa [#allocation9], 1

</llo_original>
